<compile_context>
chip_gen: v7x
topology: tpu7x:2x2x1
jax: 0.10.0
libtpu: 0.0.40
codegen_flags: <defaults>
</compile_context>

<pallas_src>
import math
import functools

import jax
import jax.numpy as jnp
from jax import lax
from jax.experimental import pallas as pl
from jax.experimental.pallas import tpu as pltpu


def _mha_kernel(x_ref, wqkv_ref, bqkv_ref, wout_ref, bout_ref, out_ref,
                qkv_ref, ctx_ref, *, num_heads, head_dim, group_size):
    """One batch element per grid step.

    x_ref:    (1, S, H)   compute dtype
    wqkv_ref: (H, 3H)     compute dtype, columns [Q | K | V]; Q pre-scaled by 1/sqrt(hd)
    bqkv_ref: (1, 3H)     f32 (Q part pre-scaled)
    wout_ref: (H, H)      compute dtype
    bout_ref: (1, H)      f32
    out_ref:  (1, S, H)   input dtype
    qkv_ref:  (S, 3H)     compute-dtype VMEM scratch
    ctx_ref:  (S, H)      compute-dtype VMEM scratch
    """
    cdt = wqkv_ref.dtype
    hd = head_dim
    H = num_heads * hd
    Gh = group_size * hd
    num_groups = num_heads // group_size

    x = x_ref[0]                                                 # (S, H)

    # Fused full-width QKV projection: one MXU call (N = 3H), f32 accumulation.
    qkv = jnp.dot(x, wqkv_ref[...],
                  preferred_element_type=jnp.float32) + bqkv_ref[...]
    qkv_ref[...] = qkv.astype(cdt)

    # Head-group loop (static: num_groups is tiny -> fully visible to the
    # scheduler; all slices below are static & group-aligned).
    for g in range(num_groups):
        q0 = g * Gh
        q_grp = qkv_ref[:, q0:q0 + Gh]                           # (S, Gh)
        k_grp = qkv_ref[:, H + q0:H + q0 + Gh]                   # (S, Gh)
        v_grp = qkv_ref[:, 2 * H + q0:2 * H + q0 + Gh]           # (S, Gh)

        ctx_parts = []
        for i in range(group_size):
            lo, hi = i * hd, (i + 1) * hd
            q = q_grp[:, lo:hi]                                  # (S, hd), already scaled
            k = k_grp[:, lo:hi]
            v = v_grp[:, lo:hi]

            # scores = q @ k^T via contraction on the head dim (no XLU transpose).
            s = lax.dot_general(q, k, (((1,), (1,)), ((), ())),
                                preferred_element_type=jnp.float32)   # (S, S)

            m = jnp.max(s, axis=-1, keepdims=True)
            p = jnp.exp(s - m)
            l = jnp.sum(p, axis=-1, keepdims=True)

            c = jnp.dot(p.astype(cdt), v,
                        preferred_element_type=jnp.float32)           # (S, hd)
            # Fold the softmax normalization into the small (S, hd) ctx tile
            # instead of the (S, S) probs tile; reciprocal goes to the EUP slot.
            c = c * pl.reciprocal(l, approx=True)
            ctx_parts.append(c.astype(cdt))

        ctx_grp = ctx_parts[0] if group_size == 1 else jnp.concatenate(
            ctx_parts, axis=-1)                                  # (S, Gh)
        ctx_ref[:, q0:q0 + Gh] = ctx_grp                         # group-wide aligned store

    # Single output projection with full contraction depth K = H, bias once.
    out = jnp.dot(ctx_ref[...], wout_ref[...],
                  preferred_element_type=jnp.float32) + bout_ref[...]
    out_ref[0] = out.astype(out_ref.dtype)


def faster_multi_head_attention(x, w_qkv, b_qkv, w_out, b_out, *,
                                num_heads, matmul_dtype=None, group_target=256):
    """x: (B, S, H); w_qkv: (H, 3H); b_qkv: (3H,); w_out: (H, H); b_out: (H,).

    matmul_dtype: dtype for MXU operands (e.g. jnp.bfloat16 on v6e/v7x);
    accumulation is always f32. Defaults to x.dtype.
    group_target: max group width in lanes (256 for v6e/v7x MXU tiles; use 128
    on v5e).
    """
    B, S, H = x.shape
    hd = H // num_heads
    assert hd * num_heads == H
    cdt = matmul_dtype if matmul_dtype is not None else x.dtype

    # Fold 1/sqrt(hd) into the Q columns of the QKV projection (one-time
    # parameter transform; removes all in-kernel scaling).
    scale = 1.0 / math.sqrt(hd)
    w_qkv_s = jnp.concatenate([w_qkv[:, :H] * scale, w_qkv[:, H:]], axis=1)
    b_qkv_s = jnp.concatenate([b_qkv[:H] * scale, b_qkv[H:]])

    w_qkv_c = w_qkv_s.astype(cdt)                                # (H, 3H)
    b_qkv_2 = b_qkv_s.reshape(1, 3 * H).astype(jnp.float32)      # (1, 3H)
    w_out_c = w_out.astype(cdt)                                  # (H, H)
    b_out_2 = b_out.reshape(1, H).astype(jnp.float32)            # (1, H)
    x_c = x.astype(cdt)

    # Largest head-group that divides num_heads with joint width <= group_target.
    group_size = 1
    for g in range(1, num_heads + 1):
        if num_heads % g == 0 and g * hd <= group_target:
            group_size = g

    kernel = functools.partial(_mha_kernel, num_heads=num_heads,
                               head_dim=hd, group_size=group_size)

    return pl.pallas_call(
        kernel,
        out_shape=jax.ShapeDtypeStruct((B, S, H), x.dtype),
        grid_spec=pltpu.PrefetchScalarGridSpec(
            num_scalar_prefetch=0,
            grid=(B,),
            in_specs=[
                pl.BlockSpec((1, S, H), lambda b: (b, 0, 0)),    # x: per batch
                # Constant index maps -> weights/biases are DMA'd once and stay
                # VMEM-resident for the whole grid.
                pl.BlockSpec((H, 3 * H), lambda b: (0, 0)),      # w_qkv
                pl.BlockSpec((1, 3 * H), lambda b: (0, 0)),      # b_qkv
                pl.BlockSpec((H, H), lambda b: (0, 0)),          # w_out
                pl.BlockSpec((1, H), lambda b: (0, 0)),          # b_out
            ],
            out_specs=pl.BlockSpec((1, S, H), lambda b: (b, 0, 0)),
            scratch_shapes=[
                pltpu.VMEM((S, 3 * H), cdt),                     # qkv scratch
                pltpu.VMEM((S, H), cdt),                         # ctx scratch
            ],
        ),
        compiler_params=pltpu.CompilerParams(
            dimension_semantics=("parallel",),
            vmem_limit_bytes=64 * 1024 * 1024),
    )(x_c, w_qkv_c, b_qkv_2, w_out_c, b_out_2)


def _reference(x, w_qkv, b_qkv, w_out, b_out, *, num_heads):
    B, S, H = x.shape
    hd = H // num_heads
    qkv = jnp.einsum("bsh,hd->bsd", x, w_qkv) + b_qkv
    q, k, v = jnp.split(qkv, 3, axis=-1)

    def heads(t):  # (B, S, H) -> (B, nh, S, hd)
        return t.reshape(B, S, num_heads, hd).transpose(0, 2, 1, 3)

    q, k, v = heads(q), heads(k), heads(v)
    scores = jnp.einsum("bnqd,bnkd->bnqk", q, k) / math.sqrt(hd)
    probs = jax.nn.softmax(scores, axis=-1)
    ctx = jnp.einsum("bnqk,bnkd->bnqd", probs, v)
    ctx = ctx.transpose(0, 2, 1, 3).reshape(B, S, H)
    return jnp.einsum("bsh,hd->bsd", ctx, w_out) + b_out


if __name__ == "__main__":
    # Small ViT-like config: hidden_size=32, num_attention_heads=4, qkv_bias=True.
    batch, seq, hidden, num_heads = 2, 8, 32, 4

    key = jax.random.PRNGKey(0)
    kx, k1, k2, k3, k4 = jax.random.split(key, 5)

    x = jax.random.normal(kx, (batch, seq, hidden), dtype=jnp.float32)
    w_qkv = jax.random.normal(k1, (hidden, 3 * hidden), dtype=jnp.float32) * 0.05
    b_qkv = jax.random.normal(k2, (3 * hidden,), dtype=jnp.float32) * 0.05
    w_out = jax.random.normal(k3, (hidden, hidden), dtype=jnp.float32) * 0.05
    b_out = jax.random.normal(k4, (hidden,), dtype=jnp.float32) * 0.05

    ref = _reference(x, w_qkv, b_qkv, w_out, b_out, num_heads=num_heads)

    # f32 path (approx reciprocal in softmax -> slightly looser tolerance).
    out = faster_multi_head_attention(x, w_qkv, b_qkv, w_out, b_out,
                                      num_heads=num_heads)
    out = jax.block_until_ready(out)
    assert out.shape == (batch, seq, hidden)
    assert jnp.allclose(out, ref, atol=2e-3, rtol=2e-3), "f32 mismatch vs reference"

    # bf16 matmul operands (f32 accumulation) — the v6e/v7x fast path.
    out_bf16 = faster_multi_head_attention(x, w_qkv, b_qkv, w_out, b_out,
                                           num_heads=num_heads,
                                           matmul_dtype=jnp.bfloat16)
    out_bf16 = jax.block_until_ready(out_bf16)
    assert jnp.allclose(out_bf16, ref, atol=5e-2, rtol=5e-2), "bf16 mismatch vs reference"

    print("KERNEL_OK")
</pallas_src>

<mosaic_0001>
module attributes {stable_mosaic.version = 11 : i64} {
  func.func @_mha_kernel(%arg0: i32, %arg1: memref<1x8x32xf32, #tpu.memory_space<vmem>>, %arg2: memref<32x96xf32, #tpu.memory_space<vmem>>, %arg3: memref<1x96xf32, #tpu.memory_space<vmem>>, %arg4: memref<32x32xf32, #tpu.memory_space<vmem>>, %arg5: memref<1x32xf32, #tpu.memory_space<vmem>>, %arg6: memref<1x8x32xf32, #tpu.memory_space<vmem>>, %arg7: memref<8x96xf32, #tpu.memory_space<vmem>>, %arg8: memref<8x32xf32, #tpu.memory_space<vmem>>) attributes {dimension_semantics = [#tpu.dimension_semantics<parallel>], iteration_bounds = array<i64: 2>, scalar_prefetch = 0 : i64, scratch_operands = 2 : i64, tpu.core_type = #tpu.core_type<tc>, window_params = [{transform_indices = @transform_0, window_bounds = array<i64: 1, 8, 32>}, {pipeline_mode = #tpu.pipeline_mode<synchronous>, transform_indices = @transform_1, window_bounds = array<i64: 32, 96>}, {pipeline_mode = #tpu.pipeline_mode<synchronous>, transform_indices = @transform_2, window_bounds = array<i64: 1, 96>}, {pipeline_mode = #tpu.pipeline_mode<synchronous>, transform_indices = @transform_3, window_bounds = array<i64: 32, 32>}, {pipeline_mode = #tpu.pipeline_mode<synchronous>, transform_indices = @transform_4, window_bounds = array<i64: 1, 32>}, {transform_indices = @transform_5, window_bounds = array<i64: 1, 8, 32>}]} {
    %c0 = arith.constant 0 : index
    %c0_0 = arith.constant 0 : index
    %c0_1 = arith.constant 0 : index
    %0 = vector.load %arg1[%c0, %c0_0, %c0_1] : memref<1x8x32xf32, #tpu.memory_space<vmem>>, vector<1x8x32xf32>
    %1 = vector.shape_cast %0 : vector<1x8x32xf32> to vector<8x32xf32>
    %c0_2 = arith.constant 0 : index
    %c0_3 = arith.constant 0 : index
    %2 = vector.load %arg2[%c0_2, %c0_3] : memref<32x96xf32, #tpu.memory_space<vmem>>, vector<32x96xf32>
    %cst = arith.constant dense<0.000000e+00> : vector<8x96xf32>
    %3 = tpu.matmul %1, %2, %cst {dimension_numbers = #tpu.dot_dimension_numbers<[1], [0], [0], [1], [0, 0, 1, 1], [], []>} : vector<8x32xf32>, vector<32x96xf32>, vector<8x96xf32> -> vector<8x96xf32>
    %c0_4 = arith.constant 0 : index
    %c0_5 = arith.constant 0 : index
    %4 = vector.load %arg3[%c0_4, %c0_5] : memref<1x96xf32, #tpu.memory_space<vmem>>, vector<1x96xf32>
    %5 = vector.broadcast %4 : vector<1x96xf32> to vector<8x96xf32>
    %6 = arith.addf %3, %5 : vector<8x96xf32>
    %c0_6 = arith.constant 0 : index
    %c0_7 = arith.constant 0 : index
    %7 = vector.load %arg7[%c0_6, %c0_7] : memref<8x96xf32, #tpu.memory_space<vmem>>, vector<8x96xf32>
    tpu.vector_store %arg7[%c0_6, %c0_7], %6 {strides = array<i32>} : memref<8x96xf32, #tpu.memory_space<vmem>>, vector<8x96xf32>,
    %c0_8 = arith.constant 0 : index
    %c0_9 = arith.constant 0 : index
    %8 = vector.load %arg7[%c0_8, %c0_9] : memref<8x96xf32, #tpu.memory_space<vmem>>, vector<8x32xf32>
    %c0_10 = arith.constant 0 : index
    %c32 = arith.constant 32 : index
    %9 = vector.load %arg7[%c0_10, %c32] : memref<8x96xf32, #tpu.memory_space<vmem>>, vector<8x32xf32>
    %c0_11 = arith.constant 0 : index
    %c64 = arith.constant 64 : index
    %10 = vector.load %arg7[%c0_11, %c64] : memref<8x96xf32, #tpu.memory_space<vmem>>, vector<8x32xf32>
    %11 = vector.extract_strided_slice %8 {offsets = [0, 0], sizes = [8, 8], strides = [1, 1]} : vector<8x32xf32> to vector<8x8xf32>
    %12 = vector.extract_strided_slice %9 {offsets = [0, 0], sizes = [8, 8], strides = [1, 1]} : vector<8x32xf32> to vector<8x8xf32>
    %13 = vector.extract_strided_slice %10 {offsets = [0, 0], sizes = [8, 8], strides = [1, 1]} : vector<8x32xf32> to vector<8x8xf32>
    %cst_12 = arith.constant dense<0.000000e+00> : vector<8x8xf32>
    %14 = tpu.matmul %11, %12, %cst_12 {dimension_numbers = #tpu.dot_dimension_numbers<[1], [1], [0], [0], [0, 0, 1, 0], [], []>} : vector<8x8xf32>, vector<8x8xf32>, vector<8x8xf32> -> vector<8x8xf32>
    %cst_13 = arith.constant dense<0xFF800000> : vector<8xf32>
    %15 = vector.multi_reduction <maximumf>, %14, %cst_13 [1] : vector<8x8xf32> to vector<8xf32>
    %16 = vector.shape_cast %15 : vector<8xf32> to vector<8x1xf32>
    %17 = vector.broadcast %16 : vector<8x1xf32> to vector<8x8xf32>
    %18 = arith.subf %14, %17 : vector<8x8xf32>
    %19 = math.exp %18 : vector<8x8xf32>
    %cst_14 = arith.constant dense<0.000000e+00> : vector<8xf32>
    %20 = vector.multi_reduction <add>, %19, %cst_14 [1] : vector<8x8xf32> to vector<8xf32>
    %21 = vector.shape_cast %20 : vector<8xf32> to vector<8x1xf32>
    %cst_15 = arith.constant dense<0.000000e+00> : vector<8x8xf32>
    %22 = tpu.matmul %19, %13, %cst_15 {dimension_numbers = #tpu.dot_dimension_numbers<[1], [0], [0], [1], [0, 0, 1, 1], [], []>} : vector<8x8xf32>, vector<8x8xf32>, vector<8x8xf32> -> vector<8x8xf32>
    %23 = tpu.reciprocal %21 {approx = true} : vector<8x1xf32> -> vector<8x1xf32>
    %24 = vector.broadcast %23 : vector<8x1xf32> to vector<8x8xf32>
    %25 = arith.mulf %22, %24 : vector<8x8xf32>
    %26 = vector.extract_strided_slice %8 {offsets = [0, 8], sizes = [8, 8], strides = [1, 1]} : vector<8x32xf32> to vector<8x8xf32>
    %27 = vector.extract_strided_slice %9 {offsets = [0, 8], sizes = [8, 8], strides = [1, 1]} : vector<8x32xf32> to vector<8x8xf32>
    %28 = vector.extract_strided_slice %10 {offsets = [0, 8], sizes = [8, 8], strides = [1, 1]} : vector<8x32xf32> to vector<8x8xf32>
    %cst_16 = arith.constant dense<0.000000e+00> : vector<8x8xf32>
    %29 = tpu.matmul %26, %27, %cst_16 {dimension_numbers = #tpu.dot_dimension_numbers<[1], [1], [0], [0], [0, 0, 1, 0], [], []>} : vector<8x8xf32>, vector<8x8xf32>, vector<8x8xf32> -> vector<8x8xf32>
    %cst_17 = arith.constant dense<0xFF800000> : vector<8xf32>
    %30 = vector.multi_reduction <maximumf>, %29, %cst_17 [1] : vector<8x8xf32> to vector<8xf32>
    %31 = vector.shape_cast %30 : vector<8xf32> to vector<8x1xf32>
    %32 = vector.broadcast %31 : vector<8x1xf32> to vector<8x8xf32>
    %33 = arith.subf %29, %32 : vector<8x8xf32>
    %34 = math.exp %33 : vector<8x8xf32>
    %cst_18 = arith.constant dense<0.000000e+00> : vector<8xf32>
    %35 = vector.multi_reduction <add>, %34, %cst_18 [1] : vector<8x8xf32> to vector<8xf32>
    %36 = vector.shape_cast %35 : vector<8xf32> to vector<8x1xf32>
    %cst_19 = arith.constant dense<0.000000e+00> : vector<8x8xf32>
    %37 = tpu.matmul %34, %28, %cst_19 {dimension_numbers = #tpu.dot_dimension_numbers<[1], [0], [0], [1], [0, 0, 1, 1], [], []>} : vector<8x8xf32>, vector<8x8xf32>, vector<8x8xf32> -> vector<8x8xf32>
    %38 = tpu.reciprocal %36 {approx = true} : vector<8x1xf32> -> vector<8x1xf32>
    %39 = vector.broadcast %38 : vector<8x1xf32> to vector<8x8xf32>
    %40 = arith.mulf %37, %39 : vector<8x8xf32>
    %41 = vector.extract_strided_slice %8 {offsets = [0, 16], sizes = [8, 8], strides = [1, 1]} : vector<8x32xf32> to vector<8x8xf32>
    %42 = vector.extract_strided_slice %9 {offsets = [0, 16], sizes = [8, 8], strides = [1, 1]} : vector<8x32xf32> to vector<8x8xf32>
    %43 = vector.extract_strided_slice %10 {offsets = [0, 16], sizes = [8, 8], strides = [1, 1]} : vector<8x32xf32> to vector<8x8xf32>
    %cst_20 = arith.constant dense<0.000000e+00> : vector<8x8xf32>
    %44 = tpu.matmul %41, %42, %cst_20 {dimension_numbers = #tpu.dot_dimension_numbers<[1], [1], [0], [0], [0, 0, 1, 0], [], []>} : vector<8x8xf32>, vector<8x8xf32>, vector<8x8xf32> -> vector<8x8xf32>
    %cst_21 = arith.constant dense<0xFF800000> : vector<8xf32>
    %45 = vector.multi_reduction <maximumf>, %44, %cst_21 [1] : vector<8x8xf32> to vector<8xf32>
    %46 = vector.shape_cast %45 : vector<8xf32> to vector<8x1xf32>
    %47 = vector.broadcast %46 : vector<8x1xf32> to vector<8x8xf32>
    %48 = arith.subf %44, %47 : vector<8x8xf32>
    %49 = math.exp %48 : vector<8x8xf32>
    %cst_22 = arith.constant dense<0.000000e+00> : vector<8xf32>
    %50 = vector.multi_reduction <add>, %49, %cst_22 [1] : vector<8x8xf32> to vector<8xf32>
    %51 = vector.shape_cast %50 : vector<8xf32> to vector<8x1xf32>
    %cst_23 = arith.constant dense<0.000000e+00> : vector<8x8xf32>
    %52 = tpu.matmul %49, %43, %cst_23 {dimension_numbers = #tpu.dot_dimension_numbers<[1], [0], [0], [1], [0, 0, 1, 1], [], []>} : vector<8x8xf32>, vector<8x8xf32>, vector<8x8xf32> -> vector<8x8xf32>
    %53 = tpu.reciprocal %51 {approx = true} : vector<8x1xf32> -> vector<8x1xf32>
    %54 = vector.broadcast %53 : vector<8x1xf32> to vector<8x8xf32>
    %55 = arith.mulf %52, %54 : vector<8x8xf32>
    %56 = vector.extract_strided_slice %8 {offsets = [0, 24], sizes = [8, 8], strides = [1, 1]} : vector<8x32xf32> to vector<8x8xf32>
    %57 = vector.extract_strided_slice %9 {offsets = [0, 24], sizes = [8, 8], strides = [1, 1]} : vector<8x32xf32> to vector<8x8xf32>
    %58 = vector.extract_strided_slice %10 {offsets = [0, 24], sizes = [8, 8], strides = [1, 1]} : vector<8x32xf32> to vector<8x8xf32>
    %cst_24 = arith.constant dense<0.000000e+00> : vector<8x8xf32>
    %59 = tpu.matmul %56, %57, %cst_24 {dimension_numbers = #tpu.dot_dimension_numbers<[1], [1], [0], [0], [0, 0, 1, 0], [], []>} : vector<8x8xf32>, vector<8x8xf32>, vector<8x8xf32> -> vector<8x8xf32>
    %cst_25 = arith.constant dense<0xFF800000> : vector<8xf32>
    %60 = vector.multi_reduction <maximumf>, %59, %cst_25 [1] : vector<8x8xf32> to vector<8xf32>
    %61 = vector.shape_cast %60 : vector<8xf32> to vector<8x1xf32>
    %62 = vector.broadcast %61 : vector<8x1xf32> to vector<8x8xf32>
    %63 = arith.subf %59, %62 : vector<8x8xf32>
    %64 = math.exp %63 : vector<8x8xf32>
    %cst_26 = arith.constant dense<0.000000e+00> : vector<8xf32>
    %65 = vector.multi_reduction <add>, %64, %cst_26 [1] : vector<8x8xf32> to vector<8xf32>
    %66 = vector.shape_cast %65 : vector<8xf32> to vector<8x1xf32>
    %cst_27 = arith.constant dense<0.000000e+00> : vector<8x8xf32>
    %67 = tpu.matmul %64, %58, %cst_27 {dimension_numbers = #tpu.dot_dimension_numbers<[1], [0], [0], [1], [0, 0, 1, 1], [], []>} : vector<8x8xf32>, vector<8x8xf32>, vector<8x8xf32> -> vector<8x8xf32>
    %68 = tpu.reciprocal %66 {approx = true} : vector<8x1xf32> -> vector<8x1xf32>
    %69 = vector.broadcast %68 : vector<8x1xf32> to vector<8x8xf32>
    %70 = arith.mulf %67, %69 : vector<8x8xf32>
    %71 = tpu.concatenate %25, %40, %55, %70 in 1 : vector<8x8xf32>, vector<8x8xf32>, vector<8x8xf32>, vector<8x8xf32> -> vector<8x32xf32>
    %c0_28 = arith.constant 0 : index
    %c0_29 = arith.constant 0 : index
    %72 = vector.load %arg8[%c0_28, %c0_29] : memref<8x32xf32, #tpu.memory_space<vmem>>, vector<8x32xf32>
    tpu.vector_store %arg8[%c0_28, %c0_29], %71 {strides = array<i32>} : memref<8x32xf32, #tpu.memory_space<vmem>>, vector<8x32xf32>,
    %c0_30 = arith.constant 0 : index
    %c0_31 = arith.constant 0 : index
    %73 = vector.load %arg8[%c0_30, %c0_31] : memref<8x32xf32, #tpu.memory_space<vmem>>, vector<8x32xf32>
    %c0_32 = arith.constant 0 : index
    %c0_33 = arith.constant 0 : index
    %74 = vector.load %arg4[%c0_32, %c0_33] : memref<32x32xf32, #tpu.memory_space<vmem>>, vector<32x32xf32>
    %cst_34 = arith.constant dense<0.000000e+00> : vector<8x32xf32>
    %75 = tpu.matmul %73, %74, %cst_34 {dimension_numbers = #tpu.dot_dimension_numbers<[1], [0], [0], [1], [0, 0, 1, 1], [], []>} : vector<8x32xf32>, vector<32x32xf32>, vector<8x32xf32> -> vector<8x32xf32>
    %c0_35 = arith.constant 0 : index
    %c0_36 = arith.constant 0 : index
    %76 = vector.load %arg5[%c0_35, %c0_36] : memref<1x32xf32, #tpu.memory_space<vmem>>, vector<1x32xf32>
    %77 = vector.broadcast %76 : vector<1x32xf32> to vector<8x32xf32>
    %78 = arith.addf %75, %77 : vector<8x32xf32>
    %c0_37 = arith.constant 0 : index
    %c0_38 = arith.constant 0 : index
    %c0_39 = arith.constant 0 : index
    %79 = vector.load %arg6[%c0_37, %c0_38, %c0_39] : memref<1x8x32xf32, #tpu.memory_space<vmem>>, vector<1x8x32xf32>
    %80 = vector.shape_cast %79 : vector<1x8x32xf32> to vector<8x32xf32>
    %81 = vector.shape_cast %78 : vector<8x32xf32> to vector<1x8x32xf32>
    tpu.vector_store %arg6[%c0_37, %c0_38, %c0_39], %81 {strides = array<i32>} : memref<1x8x32xf32, #tpu.memory_space<vmem>>, vector<1x8x32xf32>,
    return
  }
  func.func @transform_0(%arg0: i32) -> (i32, i32, i32) {
    %c0_i32 = arith.constant 0 : i32
    %c0_i32_0 = arith.constant 0 : i32
    %c0_i32_1 = arith.constant 0 : i32
    return %arg0, %c0_i32, %c0_i32_0 : i32, i32, i32
  }
  func.func @transform_1(%arg0: i32) -> (i32, i32) {
    %c0_i32 = arith.constant 0 : i32
    %c0_i32_0 = arith.constant 0 : i32
    %c0_i32_1 = arith.constant 0 : i32
    return %c0_i32, %c0_i32_0 : i32, i32
  }
  func.func @transform_2(%arg0: i32) -> (i32, i32) {
    %c0_i32 = arith.constant 0 : i32
    %c0_i32_0 = arith.constant 0 : i32
    %c0_i32_1 = arith.constant 0 : i32
    return %c0_i32, %c0_i32_0 : i32, i32
  }
  func.func @transform_3(%arg0: i32) -> (i32, i32) {
    %c0_i32 = arith.constant 0 : i32
    %c0_i32_0 = arith.constant 0 : i32
    %c0_i32_1 = arith.constant 0 : i32
    return %c0_i32, %c0_i32_0 : i32, i32
  }
  func.func @transform_4(%arg0: i32) -> (i32, i32) {
    %c0_i32 = arith.constant 0 : i32
    %c0_i32_0 = arith.constant 0 : i32
    %c0_i32_1 = arith.constant 0 : i32
    return %c0_i32, %c0_i32_0 : i32, i32
  }
  func.func @transform_5(%arg0: i32) -> (i32, i32, i32) {
    %c0_i32 = arith.constant 0 : i32
    %c0_i32_0 = arith.constant 0 : i32
    %c0_i32_1 = arith.constant 0 : i32
    return %arg0, %c0_i32, %c0_i32_0 : i32, i32, i32
  }
}

</mosaic_0001>

<llo_original>
// kernel: tpu_custom_call.1
$region0: #{tpu_custom_call.1}
  #allocation0 [shape = 'u32[]', space=smem, size = 0x4, offset = 0x4, fixed_abs, tag = 'smem constant byte address 0x4 - core index']
  #allocation1 [shape = 'u32[144,128]{1,0:T(1,128)}', space=vmem, size = 0x12000, scoped, tag = 'internal scratch']
  #allocation2 [shape = 'f32[8,96]{1,0:T(8,128)}', space=vmem, size = 0x1000, scoped, tag = 'scratch operand']
  #allocation3 [shape = 'f32[8,32]{1,0:T(8,128)}', space=vmem, size = 0x1000, scoped, tag = 'scratch operand']
  %s0 = inlined_call_operand.hbm [shape: f32[2,8,32], index: 0, kind: input, shape index: {}]
  %s1 = inlined_call_operand.hbm [shape: f32[32,96], index: 1, kind: input, shape index: {}]
  %s2 = inlined_call_operand.hbm [shape: f32[1,96], index: 2, kind: input, shape index: {}]
  %s3 = inlined_call_operand.hbm [shape: f32[32,32], index: 3, kind: input, shape index: {}]
  %s4 = inlined_call_operand.hbm [shape: f32[1,32], index: 4, kind: input, shape index: {}]
  %s5 = inlined_call_operand.hbm [shape: f32[2,8,32], index: 5, kind: output, shape index: {}]
  %s6 = sld [smem:[#allocation0]]
  $region73: #{tpu_custom_call.1} parent=0
    _
  %s8 = ssub.s32 1, %s6
  %s9 = scalar_select 0, %s8, %s6
  $region1: #{tpu_custom_call.1} parent=0
    #allocation4 [shape = 'u8[8192]{0}', space=vmem, size = 0x2000, scoped, tag = 'input window, operand 0']
    #allocation5 [shape = 's32[2]{0}', space=sflag, size = 0x8, scoped, tag = 'scoped memory for tpu_custom_call.1']
    #allocation6 [shape = 's32[2]{0}', space=sflag, size = 0x8, scoped, tag = 'scoped memory for tpu_custom_call.1']
    #allocation7 [shape = 'u8[16384]{0}', space=vmem, size = 0x4000, scoped, tag = 'input window, operand 1, single buffered']
    #allocation8 [shape = 's32[1]{0}', space=sflag, size = 0x4, scoped, tag = 'scoped memory for tpu_custom_call.1']
    #allocation9 [shape = 'u8[512]{0}', space=vmem, size = 0x400, scoped, tag = 'input window, operand 2, single buffered']
    #allocation10 [shape = 'u8[16384]{0}', space=vmem, size = 0x4000, scoped, tag = 'input window, operand 3, single buffered']
    #allocation11 [shape = 's32[1]{0}', space=sflag, size = 0x4, scoped, tag = 'scoped memory for tpu_custom_call.1']
    #allocation12 [shape = 'u8[512]{0}', space=vmem, size = 0x400, scoped, tag = 'input window, operand 4, single buffered']
    #allocation13 [shape = 'u8[8192]{0}', space=vmem, size = 0x2000, scoped, tag = 'output window, operand 0']
    %10 = vsyncpa [#allocation5], 0
    %s11 = scalar_lea.sflag [#allocation5], 1
    %12 = vsyncpa %s11, 0
    %13 = vsyncpa [#allocation8], 0
    %14 = vsyncpa [#allocation11], 0
    %15 = vsyncpa [#allocation6], 0
    %s16 = scalar_lea.sflag [#allocation6], 1
    %17 = vsyncpa %s16, 0
    loop: start=0, step=1, limit=4
    $region2: #{tpu_custom_call.1} parent=1 // loop_pre_header
      _
    $region3: #{tpu_custom_call.1} parent=1 // loop_header
      %s19 = sphi 0, %s23
      %p20 = scmp.ge.s32.totalorder %s19, 4
      %s29 = sphi 0, %s31
      %s32 = sphi 0, %s29
      %s33 = sphi 0, %s32
      %s49 = sphi 0, %s33
      %s53 = sphi 0, %s53
      %s55 = sphi 0, %s53
      %s56 = sphi 0, %s55
      %s70 = sphi 0, %s56
      %s74 = sphi 0, %s74
      %s76 = sphi 0, %s74
      %s77 = sphi 0, %s76
      %s91 = sphi 0, %s77
      %s95 = sphi 0, %s95
      %s97 = sphi 0, %s95
      %s98 = sphi 0, %s97
      %s112 = sphi 0, %s98
      %s116 = sphi 0, %s116
      %s118 = sphi 0, %s116
      %s119 = sphi 0, %s118
      %s133 = sphi 0, %s119
      %s139 = sphi 0, %s141
      %s142 = sphi 0, %s139
      %s143 = sphi 0, %s142
      %s159 = sphi 0, %s143
    $region4: #{tpu_custom_call.1} parent=1 // loop_header_branch
      %22 = sbr.rel (%p20) target = $region8
    $region5: #{tpu_custom_call.1} parent=1 // loop_body
      %s24 = ssub.s32 %s19, 1
      %s25 = ssub.s32 %s19, 2
      %s26 = sadd.s32 %s19, 1
      %s27 = ssub.s32 %s19, %s26
      %p28 = scmp.eq.s32.totalorder %s27, 0
      %s30 = sadd.s32 %s29, 1
      %s31 = scalar_select %p28, %s29, %s30
      %p34 = pneg %p28
      %p35 = scmp.eq.s32.totalorder %s19, 1
      %p36 = por %p34, %p35
      %p37 = scmp.ne.s32.totalorder %s29, %s32
      %p38 = scmp.eq.s32.totalorder %s19, 0
      %p39 = por %p37, %p38
      %p40 = scmp.ne.s32.totalorder %s29, %s32
      %p41 = scmp.eq.s32.totalorder %s24, 1
      %p42 = por %p40, %p41
      %p43 = scmp.ne.s32.totalorder %s32, %s33
      %p44 = scmp.eq.s32.totalorder %s24, 0
      %p45 = por %p43, %p44
      %p46 = scmp.ne.s32.totalorder %s32, %s33
      %p47 = scmp.eq.s32.totalorder %s25, 1
      %p48 = por %p46, %p47
      %p50 = scmp.ne.s32.totalorder %s33, %s49
      %p51 = scmp.eq.s32.totalorder %s25, 0
      %p52 = por %p50, %p51
      %s54 = sadd.s32 %s53, 1
      %p57 = scmp.eq.s32.totalorder %s19, 1
      %p58 = scmp.ne.s32.totalorder %s53, %s55
      %p59 = scmp.eq.s32.totalorder %s19, 0
      %p60 = por %p58, %p59
      %p61 = scmp.ne.s32.totalorder %s53, %s55
      %p62 = scmp.eq.s32.totalorder %s24, 1
      %p63 = por %p61, %p62
      %p64 = scmp.ne.s32.totalorder %s55, %s56
      %p65 = scmp.eq.s32.totalorder %s24, 0
      %p66 = por %p64, %p65
      %p67 = scmp.ne.s32.totalorder %s55, %s56
      %p68 = scmp.eq.s32.totalorder %s25, 1
      %p69 = por %p67, %p68
      %p71 = scmp.ne.s32.totalorder %s56, %s70
      %p72 = scmp.eq.s32.totalorder %s25, 0
      %p73 = por %p71, %p72
      %s75 = sadd.s32 %s74, 1
      %p78 = scmp.eq.s32.totalorder %s19, 1
      %p79 = scmp.ne.s32.totalorder %s74, %s76
      %p80 = scmp.eq.s32.totalorder %s19, 0
      %p81 = por %p79, %p80
      %p82 = scmp.ne.s32.totalorder %s74, %s76
      %p83 = scmp.eq.s32.totalorder %s24, 1
      %p84 = por %p82, %p83
      %p85 = scmp.ne.s32.totalorder %s76, %s77
      %p86 = scmp.eq.s32.totalorder %s24, 0
      %p87 = por %p85, %p86
      %p88 = scmp.ne.s32.totalorder %s76, %s77
      %p89 = scmp.eq.s32.totalorder %s25, 1
      %p90 = por %p88, %p89
      %p92 = scmp.ne.s32.totalorder %s77, %s91
      %p93 = scmp.eq.s32.totalorder %s25, 0
      %p94 = por %p92, %p93
      %s96 = sadd.s32 %s95, 1
      %p99 = scmp.eq.s32.totalorder %s19, 1
      %p100 = scmp.ne.s32.totalorder %s95, %s97
      %p101 = scmp.eq.s32.totalorder %s19, 0
      %p102 = por %p100, %p101
      %p103 = scmp.ne.s32.totalorder %s95, %s97
      %p104 = scmp.eq.s32.totalorder %s24, 1
      %p105 = por %p103, %p104
      %p106 = scmp.ne.s32.totalorder %s97, %s98
      %p107 = scmp.eq.s32.totalorder %s24, 0
      %p108 = por %p106, %p107
      %p109 = scmp.ne.s32.totalorder %s97, %s98
      %p110 = scmp.eq.s32.totalorder %s25, 1
      %p111 = por %p109, %p110
      %p113 = scmp.ne.s32.totalorder %s98, %s112
      %p114 = scmp.eq.s32.totalorder %s25, 0
      %p115 = por %p113, %p114
      %s117 = sadd.s32 %s116, 1
      %p120 = scmp.eq.s32.totalorder %s19, 1
      %p121 = scmp.ne.s32.totalorder %s116, %s118
      %p122 = scmp.eq.s32.totalorder %s19, 0
      %p123 = por %p121, %p122
      %p124 = scmp.ne.s32.totalorder %s116, %s118
      %p125 = scmp.eq.s32.totalorder %s24, 1
      %p126 = por %p124, %p125
      %p127 = scmp.ne.s32.totalorder %s118, %s119
      %p128 = scmp.eq.s32.totalorder %s24, 0
      %p129 = por %p127, %p128
      %p130 = scmp.ne.s32.totalorder %s118, %s119
      %p131 = scmp.eq.s32.totalorder %s25, 1
      %p132 = por %p130, %p131
      %p134 = scmp.ne.s32.totalorder %s119, %s133
      %p135 = scmp.eq.s32.totalorder %s25, 0
      %p136 = por %p134, %p135
      %s137 = ssub.s32 %s19, %s26
      %p138 = scmp.eq.s32.totalorder %s137, 0
      %s140 = sadd.s32 %s139, 1
      %s141 = scalar_select %p138, %s139, %s140
      %p144 = pneg %p138
      %p145 = scmp.eq.s32.totalorder %s19, 1
      %p146 = por %p144, %p145
      %p147 = scmp.ne.s32.totalorder %s139, %s142
      %p148 = scmp.eq.s32.totalorder %s19, 0
      %p149 = por %p147, %p148
      %p150 = scmp.ne.s32.totalorder %s139, %s142
      %p151 = scmp.eq.s32.totalorder %s24, 1
      %p152 = por %p150, %p151
      %p153 = scmp.ne.s32.totalorder %s142, %s143
      %p154 = scmp.eq.s32.totalorder %s24, 0
      %p155 = por %p153, %p154
      %p156 = scmp.ne.s32.totalorder %s142, %s143
      %p157 = scmp.eq.s32.totalorder %s25, 1
      %p158 = por %p156, %p157
      %p160 = scmp.ne.s32.totalorder %s143, %s159
      %p161 = scmp.eq.s32.totalorder %s25, 0
      %p162 = por %p160, %p161
      %p163 = scmp.le.s32.totalorder 1, %s19
      %p164 = scmp.lt.s32.totalorder %s19, 3
      %p165 = pnand %p163, %p164
      %p166 = pneg %p165
      // Predicated region
      $region9: #{tpu_custom_call.1} parent=5 // pred_check
        _
      $region10: #{tpu_custom_call.1} parent=5 // pred_check_branch
        %168 = sbr.rel (%p165) target = $region12
      $region11: #{tpu_custom_call.1} parent=5 // pred_region
        %s169 = ssub.s32 %s19, 1
        // Predicated region
        $region13: #{tpu_custom_call.1} parent=11 // pred_check
          %p170 = pneg %p66
        $region14: #{tpu_custom_call.1} parent=11 // pred_check_branch
          %172 = sbr.rel (%p170) target = $region16
        $region15: #{tpu_custom_call.1} parent=11 // pred_region
          %s174 = ssub.s32 512, 512
          %175 = vsyncadd [#allocation8], %s174
          %s176 = sshll.u32 [#allocation7], 4
          %s177 = int_to_ptr.vmem [resolvable:$true] %s176
          %182 = dma.hbm_to_vmem [thread:$0]  %s1, 512, %s177, [#allocation8], 128, 128, 8
        $region16: #{tpu_custom_call.1} parent=11 // pred_fallthru
          _
        // Predicated region
        $region17: #{tpu_custom_call.1} parent=11 // pred_check
          %p183 = pneg %p87
        $region18: #{tpu_custom_call.1} parent=11 // pred_check_branch
          %185 = sbr.rel (%p183) target = $region20
        $region19: #{tpu_custom_call.1} parent=11 // pred_region
          %s187 = ssub.s32 16, 16
          %188 = vsyncadd [#allocation8], %s187
          %s190 = sshll.u32 [#allocation9], 4
          %s191 = int_to_ptr.vmem [resolvable:$true] %s190
          %193 = dma.hbm_to_vmem [thread:$0]  %s2, 16, %s191, [#allocation8]
        $region20: #{tpu_custom_call.1} parent=11 // pred_fallthru
          _
        // Predicated region
        $region21: #{tpu_custom_call.1} parent=11 // pred_check
          %p194 = pneg %p108
        $region22: #{tpu_custom_call.1} parent=11 // pred_check_branch
          %196 = sbr.rel (%p194) target = $region24
        $region23: #{tpu_custom_call.1} parent=11 // pred_region
          %s198 = ssub.s32 512, 512
          %199 = vsyncadd [#allocation11], %s198
          %s200 = sshll.u32 [#allocation10], 4
          %s201 = int_to_ptr.vmem [resolvable:$true] %s200
          %206 = dma.hbm_to_vmem [thread:$0]  %s3, 512, %s201, [#allocation11], 128, 128, 8
        $region24: #{tpu_custom_call.1} parent=11 // pred_fallthru
          _
        // Predicated region
        $region25: #{tpu_custom_call.1} parent=11 // pred_check
          %p207 = pneg %p129
        $region26: #{tpu_custom_call.1} parent=11 // pred_check_branch
          %209 = sbr.rel (%p207) target = $region28
        $region27: #{tpu_custom_call.1} parent=11 // pred_region
          %s211 = ssub.s32 16, 16
          %212 = vsyncadd [#allocation11], %s211
          %s214 = sshll.u32 [#allocation12], 4
          %s215 = int_to_ptr.vmem [resolvable:$true] %s214
          %217 = dma.hbm_to_vmem [thread:$0]  %s4, 16, %s215, [#allocation11]
        $region28: #{tpu_custom_call.1} parent=11 // pred_fallthru
          _
      $region12: #{tpu_custom_call.1} parent=5 // pred_fallthru
        _
      %p218 = scmp.lt.s32.totalorder %s19, 2
      // Predicated region
      $region29: #{tpu_custom_call.1} parent=5 // pred_check
        %p219 = pneg %p218
      $region30: #{tpu_custom_call.1} parent=5 // pred_check_branch
        %221 = sbr.rel (%p219) target = $region32
      $region31: #{tpu_custom_call.1} parent=5 // pred_region
        // Predicated region
        $region33: #{tpu_custom_call.1} parent=31 // pred_check
          %p222 = pneg %p39
        $region34: #{tpu_custom_call.1} parent=31 // pred_check_branch
          %224 = sbr.rel (%p222) target = $region36
        $region35: #{tpu_custom_call.1} parent=31 // pred_region
          %s225 = sand.u32 %s29, 1
          %s226 = scalar_lea.sflag [#allocation5], %s225
          %s227 = sand.u32 %s29, 1
          %s228 = smul.addr %s227, 8
          %s229 = scalar_lea.vmem [#allocation4], %s228
          %s231 = ssub.s32 128, 128
          %232 = vsyncadd %s226, %s231
          %s233 = smul.addr %s19, 128
          %s234 = scalar_lea.hbm %s0, %s233
          %s236 = sshll.u32 %s229, 4
          %s237 = int_to_ptr.vmem [resolvable:$true] %s236
          %239 = dma.hbm_to_vmem [thread:$0]  %s234, 128, %s237, %s226
        $region36: #{tpu_custom_call.1} parent=31 // pred_fallthru
          _
      $region32: #{tpu_custom_call.1} parent=5 // pred_fallthru
        _
      %p240 = scmp.le.s32.totalorder 1, %s19
      %p241 = scmp.lt.s32.totalorder %s19, 3
      %p242 = pnand %p240, %p241
      %p243 = pneg %p242
      // Predicated region
      $region37: #{tpu_custom_call.1} parent=5 // pred_check
        _
      $region38: #{tpu_custom_call.1} parent=5 // pred_check_branch
        %245 = sbr.rel (%p242) target = $region40
      $region39: #{tpu_custom_call.1} parent=5 // pred_region
        %s246 = ssub.s32 %s19, 1
        %s247 = sand.u32 %s32, 1
        %s248 = scalar_lea.sflag [#allocation5], %s247
        %s249 = sand.u32 %s32, 1
        %s250 = smul.addr %s249, 8
        %s251 = scalar_lea.vmem [#allocation4], %s250
        // Predicated region
        $region41: #{tpu_custom_call.1} parent=39 // pred_check
          %p252 = pneg %p45
        $region42: #{tpu_custom_call.1} parent=39 // pred_check_branch
          %254 = sbr.rel (%p252) target = $region44
        $region43: #{tpu_custom_call.1} parent=39 // pred_region
          %255 = dma.done %s248, 128
        $region44: #{tpu_custom_call.1} parent=39 // pred_fallthru
          _
        // Predicated region
        $region45: #{tpu_custom_call.1} parent=39 // pred_check
          %p256 = pneg %p66
        $region46: #{tpu_custom_call.1} parent=39 // pred_check_branch
          %258 = sbr.rel (%p256) target = $region48
        $region47: #{tpu_custom_call.1} parent=39 // pred_region
          %259 = dma.done [#allocation8], 512
        $region48: #{tpu_custom_call.1} parent=39 // pred_fallthru
          _
        // Predicated region
        $region49: #{tpu_custom_call.1} parent=39 // pred_check
          %p260 = pneg %p87
        $region50: #{tpu_custom_call.1} parent=39 // pred_check_branch
          %262 = sbr.rel (%p260) target = $region52
        $region51: #{tpu_custom_call.1} parent=39 // pred_region
          %263 = dma.done [#allocation8], 16
        $region52: #{tpu_custom_call.1} parent=39 // pred_fallthru
          _
        // Predicated region
        $region53: #{tpu_custom_call.1} parent=39 // pred_check
          %p264 = pneg %p108
        $region54: #{tpu_custom_call.1} parent=39 // pred_check_branch
          %266 = sbr.rel (%p264) target = $region56
        $region55: #{tpu_custom_call.1} parent=39 // pred_region
          %267 = dma.done [#allocation11], 512
        $region56: #{tpu_custom_call.1} parent=39 // pred_fallthru
          _
        // Predicated region
        $region57: #{tpu_custom_call.1} parent=39 // pred_check
          %p268 = pneg %p129
        $region58: #{tpu_custom_call.1} parent=39 // pred_check_branch
          %270 = sbr.rel (%p268) target = $region60
        $region59: #{tpu_custom_call.1} parent=39 // pred_region
          %271 = dma.done [#allocation11], 16
        $region60: #{tpu_custom_call.1} parent=39 // pred_fallthru
          _
        %s272 = sand.u32 %s32, 1
        %s273 = scalar_lea.sflag [#allocation5], %s272
        %s274 = sand.u32 %s32, 1
        %s275 = smul.addr %s274, 8
        %s276 = scalar_lea.vmem [#allocation4], %s275
        %p277 = pneg %p45
        %p278 = pneg %p42
        %p279 = pneg %p66
        %p280 = pneg %p63
        %p281 = pneg %p87
        %p282 = pneg %p84
        %p283 = pneg %p108
        %p284 = pneg %p105
        %p285 = pneg %p129
        %p286 = pneg %p126
        %p287 = pneg %p155
        %p288 = pneg %p152
        %s289 = sand.u32 %s142, 1
        %s290 = scalar_lea.sflag [#allocation6], %s289
        %s291 = sand.u32 %s142, 1
        %s292 = smul.addr %s291, 8
        %s293 = scalar_lea.vmem [#allocation13], %s292
        %v294 = vld [vmem:[%s251] sm:$0xff]
        %v295 = vld [vmem:[#allocation7] sm:$0xff]
        %v296 = vld [vmem:[#allocation7 + $0x8] sm:$0xff]
        %v297 = vld [vmem:[#allocation7 + $0x10] sm:$0xff]
        %v298 = vld [vmem:[#allocation7 + $0x18] sm:$0xff]
        %v299 = vld [vmem:[#allocation9] sm:$0x1]
        %v301 = vlaneseq
        %v302 = vshrl.u32 %v301, 7
        %v303 = vsub.s32 0, %v302
        %v304 = vrot.slane %v299, %v303
        %vm306 = vcmask 261120
        %v308 = vsel %vm306, %v294, 0
        %310 = vmatprep.subr.mxu0 0.0
        %311 = vmatpush1.msra.mxu0 %v295
        %312 = vmatprep.subr.mxu0 0.0
        %313 = vmatpush1.msra.mxu0 %v296
        %314 = vmatprep.subr.mxu0 0.0
        %315 = vmatpush1.msra.mxu0 %v297
        %316 = vmatprep.subr.mxu0 0.0
        %317 = vmatpush1.msra.mxu0 %v298
        %318 = vmatprep.subr.mxu0 0.0
        %319 = vmatpush1.msra.mxu0 0.0
        %320 = vmatprep.subr.mxu0 0.0
        %321 = vmatpush1.msra.mxu0 0.0
        %322 = vmatprep.subr.mxu0 0.0
        %323 = vmatpush1.msra.mxu0 0.0
        %324 = vmatprep.subr.mxu0 0.0
        %325 = vmatpush1.msra.mxu0 0.0
        %326 = vmatprep.subr.mxu0 0.0
        %327 = vmatpush1.msra.mxu0 0.0
        %328 = vmatprep.subr.mxu0 0.0
        %329 = vmatpush1.msra.mxu0 0.0
        %330 = vmatprep.subr.mxu0 0.0
        %331 = vmatpush1.msra.mxu0 0.0
        %332 = vmatprep.subr.mxu0 0.0
        %333 = vmatpush1.msra.mxu0 0.0
        %334 = vmatprep.subr.mxu0 0.0
        %335 = vmatpush1.msra.mxu0 0.0
        %336 = vmatprep.subr.mxu0 0.0
        %337 = vmatpush1.msra.mxu0 0.0
        %338 = vmatprep.subr.mxu0 0.0
        %339 = vmatpush1.msra.mxu0 0.0
        %340 = vmatprep.subr.mxu0 0.0
        %341 = vmatpush1.msra.mxu0 0.0
        %342 = vmatprep.subr.mxu0 0.0
        %343 = vmatpush1.msra.mxu0 0.0
        %344 = vmatprep.subr.mxu0 0.0
        %345 = vmatpush1.msra.mxu0 0.0
        %346 = vmatprep.subr.mxu0 0.0
        %347 = vmatpush1.msra.mxu0 0.0
        %348 = vmatprep.subr.mxu0 0.0
        %349 = vmatpush1.msra.mxu0 0.0
        %350 = vmatprep.subr.mxu0 0.0
        %351 = vmatpush1.msra.mxu0 0.0
        %352 = vmatprep.subr.mxu0 0.0
        %353 = vmatpush1.msra.mxu0 0.0
        %354 = vmatprep.subr.mxu0 0.0
        %355 = vmatpush1.msra.mxu0 0.0
        %356 = vmatprep.subr.mxu0 0.0
        %357 = vmatpush1.msra.mxu0 0.0
        %358 = vmatprep.subr.mxu0 0.0
        %359 = vmatpush1.msra.mxu0 0.0
        %360 = vmatprep.subr.mxu0 0.0
        %361 = vmatpush1.msra.mxu0 0.0
        %362 = vmatprep.subr.mxu0 0.0
        %363 = vmatpush1.msra.mxu0 0.0
        %364 = vmatprep.subr.mxu0 0.0
        %365 = vmatpush1.msra.mxu0 0.0
        %366 = vmatprep.subr.mxu0 0.0
        %367 = vmatpush1.msra.mxu0 0.0
        %368 = vmatprep.subr.mxu0 0.0
        %369 = vmatpush1.msra.mxu0 0.0
        %370 = vmatprep.subr.mxu0 0.0
        %371 = vmatpush1.msra.mxu0 0.0
        %372 = vmatprep.subr.mxu0 0.0
        %373 = vmatpush1.msra.mxu0 0.0
        %374 = vmatprep.mubr.f32.mxu0 0.0
        %375 = vmatmul.mubr.f32.gmra.mrb[0].mxu0 %v308
        %v376 = vpop.f32.mrb[0].mxu0
        %v377 = vadd.f32 %v304, %v376
        %v378 = vpop.f32.mrb[0].mxu0
        %379 = vdwg.mxu0
        %vm380 = vcmask 785408
        %381 = vst.msk [vmem:[#allocation2] sm:$0xff] %vm380, %v377
        %v382 = vld [vmem:[#allocation2] sm:$0xff]
        %384 = vrot.lane.b32.xlu0 %v382, 96
        %v385 = vpop.permute.xlu0 %384
        %vm386 = vcmask 64512
        %v387 = vsel %vm386, %v382, 0
        %v389 = vsel %vm386, %v385, 0
        %391 = vmatprep.subr.mxu0 0.0
        %392 = vmatpush1.xpose.msra.mxu0 %v389
        %393 = vmatprep.subr.mxu0 0.0
        %394 = vmatpush1.xpose.msra.mxu0 0.0
        %395 = vmatprep.subr.mxu0 0.0
        %396 = vmatpush1.xpose.msra.mxu0 0.0
        %397 = vmatprep.subr.mxu0 0.0
        %398 = vmatpush1.xpose.msra.mxu0 0.0
        %399 = vmatprep.subr.mxu0 0.0
        %400 = vmatpush1.xpose.msra.mxu0 0.0
        %401 = vmatprep.subr.mxu0 0.0
        %402 = vmatpush1.xpose.msra.mxu0 0.0
        %403 = vmatprep.subr.mxu0 0.0
        %404 = vmatpush1.xpose.msra.mxu0 0.0
        %405 = vmatprep.subr.mxu0 0.0
        %406 = vmatpush1.xpose.msra.mxu0 0.0
        %407 = vmatprep.subr.mxu0 0.0
        %408 = vmatpush1.xpose.msra.mxu0 0.0
        %409 = vmatprep.subr.mxu0 0.0
        %410 = vmatpush1.xpose.msra.mxu0 0.0
        %411 = vmatprep.subr.mxu0 0.0
        %412 = vmatpush1.xpose.msra.mxu0 0.0
        %413 = vmatprep.subr.mxu0 0.0
        %414 = vmatpush1.xpose.msra.mxu0 0.0
        %415 = vmatprep.subr.mxu0 0.0
        %416 = vmatpush1.xpose.msra.mxu0 0.0
        %417 = vmatprep.subr.mxu0 0.0
        %418 = vmatpush1.xpose.msra.mxu0 0.0
        %419 = vmatprep.subr.mxu0 0.0
        %420 = vmatpush1.xpose.msra.mxu0 0.0
        %421 = vmatprep.subr.mxu0 0.0
        %422 = vmatpush1.xpose.msra.mxu0 0.0
        %423 = vmatprep.subr.mxu0 0.0
        %424 = vmatpush1.xpose.msra.mxu0 0.0
        %425 = vmatprep.subr.mxu0 0.0
        %426 = vmatpush1.xpose.msra.mxu0 0.0
        %427 = vmatprep.subr.mxu0 0.0
        %428 = vmatpush1.xpose.msra.mxu0 0.0
        %429 = vmatprep.subr.mxu0 0.0
        %430 = vmatpush1.xpose.msra.mxu0 0.0
        %431 = vmatprep.subr.mxu0 0.0
        %432 = vmatpush1.xpose.msra.mxu0 0.0
        %433 = vmatprep.subr.mxu0 0.0
        %434 = vmatpush1.xpose.msra.mxu0 0.0
        %435 = vmatprep.subr.mxu0 0.0
        %436 = vmatpush1.xpose.msra.mxu0 0.0
        %437 = vmatprep.subr.mxu0 0.0
        %438 = vmatpush1.xpose.msra.mxu0 0.0
        %439 = vmatprep.subr.mxu0 0.0
        %440 = vmatpush1.xpose.msra.mxu0 0.0
        %441 = vmatprep.subr.mxu0 0.0
        %442 = vmatpush1.xpose.msra.mxu0 0.0
        %443 = vmatprep.subr.mxu0 0.0
        %444 = vmatpush1.xpose.msra.mxu0 0.0
        %445 = vmatprep.subr.mxu0 0.0
        %446 = vmatpush1.xpose.msra.mxu0 0.0
        %447 = vmatprep.subr.mxu0 0.0
        %448 = vmatpush1.xpose.msra.mxu0 0.0
        %449 = vmatprep.subr.mxu0 0.0
        %450 = vmatpush1.xpose.msra.mxu0 0.0
        %451 = vmatprep.subr.mxu0 0.0
        %452 = vmatpush1.xpose.msra.mxu0 0.0
        %453 = vmatprep.subr.mxu0 0.0
        %454 = vmatpush1.xpose.msra.mxu0 0.0
        %455 = vmatprep.mubr.f32.mxu0 0.0
        %456 = vmatmul.mubr.f32.gmra.mrb[0].mxu0 %v387
        %v457 = vpop.f32.mrb[0].mxu0
        %v458 = vadd.f32 0.0, %v457
        %v459 = vpop.f32.mrb[0].mxu0
        %460 = vdwg.mxu0
        %v461 = vsel %vm386, %v458, -inf
        %462 = vmax.xlane.f32.xlu0 %v461
        %v463 = vpop.xlane.xlu0 %462
        %v464 = vsub.f32 %v458, %v463
        %v465 = vmul.f32 %v464, 1.442695
        %v466 = vpow.pop %v465
        %v467 = vsel %vm386, %v466, 0.0
        %468 = vadd.xlane.f32.xlu0 %v467
        %v469 = vpop.xlane.xlu0 %468
        %470 = vrot.lane.b32.xlu0 %v382, 64
        %v471 = vpop.permute.xlu0 %470
        %v474 = vsel %vm386, %v466, 0
        %476 = vmatprep.subr.mxu0 0.0
        %477 = vmatpush1.msra.mxu0 %v471
        %478 = vmatprep.subr.mxu0 0.0
        %479 = vmatpush1.msra.mxu0 0.0
        %480 = vmatprep.subr.mxu0 0.0
        %481 = vmatpush1.msra.mxu0 0.0
        %482 = vmatprep.subr.mxu0 0.0
        %483 = vmatpush1.msra.mxu0 0.0
        %484 = vmatprep.subr.mxu0 0.0
        %485 = vmatpush1.msra.mxu0 0.0
        %486 = vmatprep.subr.mxu0 0.0
        %487 = vmatpush1.msra.mxu0 0.0
        %488 = vmatprep.subr.mxu0 0.0
        %489 = vmatpush1.msra.mxu0 0.0
        %490 = vmatprep.subr.mxu0 0.0
        %491 = vmatpush1.msra.mxu0 0.0
        %492 = vmatprep.subr.mxu0 0.0
        %493 = vmatpush1.msra.mxu0 0.0
        %494 = vmatprep.subr.mxu0 0.0
        %495 = vmatpush1.msra.mxu0 0.0
        %496 = vmatprep.subr.mxu0 0.0
        %497 = vmatpush1.msra.mxu0 0.0
        %498 = vmatprep.subr.mxu0 0.0
        %499 = vmatpush1.msra.mxu0 0.0
        %500 = vmatprep.subr.mxu0 0.0
        %501 = vmatpush1.msra.mxu0 0.0
        %502 = vmatprep.subr.mxu0 0.0
        %503 = vmatpush1.msra.mxu0 0.0
        %504 = vmatprep.subr.mxu0 0.0
        %505 = vmatpush1.msra.mxu0 0.0
        %506 = vmatprep.subr.mxu0 0.0
        %507 = vmatpush1.msra.mxu0 0.0
        %508 = vmatprep.subr.mxu0 0.0
        %509 = vmatpush1.msra.mxu0 0.0
        %510 = vmatprep.subr.mxu0 0.0
        %511 = vmatpush1.msra.mxu0 0.0
        %512 = vmatprep.subr.mxu0 0.0
        %513 = vmatpush1.msra.mxu0 0.0
        %514 = vmatprep.subr.mxu0 0.0
        %515 = vmatpush1.msra.mxu0 0.0
        %516 = vmatprep.subr.mxu0 0.0
        %517 = vmatpush1.msra.mxu0 0.0
        %518 = vmatprep.subr.mxu0 0.0
        %519 = vmatpush1.msra.mxu0 0.0
        %520 = vmatprep.subr.mxu0 0.0
        %521 = vmatpush1.msra.mxu0 0.0
        %522 = vmatprep.subr.mxu0 0.0
        %523 = vmatpush1.msra.mxu0 0.0
        %524 = vmatprep.subr.mxu0 0.0
        %525 = vmatpush1.msra.mxu0 0.0
        %526 = vmatprep.subr.mxu0 0.0
        %527 = vmatpush1.msra.mxu0 0.0
        %528 = vmatprep.subr.mxu0 0.0
        %529 = vmatpush1.msra.mxu0 0.0
        %530 = vmatprep.subr.mxu0 0.0
        %531 = vmatpush1.msra.mxu0 0.0
        %532 = vmatprep.subr.mxu0 0.0
        %533 = vmatpush1.msra.mxu0 0.0
        %534 = vmatprep.subr.mxu0 0.0
        %535 = vmatpush1.msra.mxu0 0.0
        %536 = vmatprep.subr.mxu0 0.0
        %537 = vmatpush1.msra.mxu0 0.0
        %538 = vmatprep.subr.mxu0 0.0
        %539 = vmatpush1.msra.mxu0 0.0
        %540 = vmatprep.mubr.f32.mxu0 0.0
        %541 = vmatmul.mubr.f32.gmra.mrb[0].mxu0 %v474
        %v542 = vpop.f32.mrb[0].mxu0
        %v543 = vadd.f32 0.0, %v542
        %v544 = vpop.f32.mrb[0].mxu0
        %545 = vdwg.mxu0
        %v546 = vrcp.pop %v469
        %v547 = vmul.f32 %v543, %v546
        %548 = vrot.lane.b32.xlu0 %v382, 120
        %v549 = vpop.permute.xlu0 %548
        %550 = vrot.lane.b32.xlu0 %v382, 88
        %v551 = vpop.permute.xlu0 %550
        %v552 = vsel %vm386, %v549, 0
        %v554 = vsel %vm386, %v551, 0
        %556 = vmatprep.subr.mxu0 0.0
        %557 = vmatpush1.xpose.msra.mxu0 %v554
        %558 = vmatprep.subr.mxu0 0.0
        %559 = vmatpush1.xpose.msra.mxu0 0.0
        %560 = vmatprep.subr.mxu0 0.0
        %561 = vmatpush1.xpose.msra.mxu0 0.0
        %562 = vmatprep.subr.mxu0 0.0
        %563 = vmatpush1.xpose.msra.mxu0 0.0
        %564 = vmatprep.subr.mxu0 0.0
        %565 = vmatpush1.xpose.msra.mxu0 0.0
        %566 = vmatprep.subr.mxu0 0.0
        %567 = vmatpush1.xpose.msra.mxu0 0.0
        %568 = vmatprep.subr.mxu0 0.0
        %569 = vmatpush1.xpose.msra.mxu0 0.0
        %570 = vmatprep.subr.mxu0 0.0
        %571 = vmatpush1.xpose.msra.mxu0 0.0
        %572 = vmatprep.subr.mxu0 0.0
        %573 = vmatpush1.xpose.msra.mxu0 0.0
        %574 = vmatprep.subr.mxu0 0.0
        %575 = vmatpush1.xpose.msra.mxu0 0.0
        %576 = vmatprep.subr.mxu0 0.0
        %577 = vmatpush1.xpose.msra.mxu0 0.0
        %578 = vmatprep.subr.mxu0 0.0
        %579 = vmatpush1.xpose.msra.mxu0 0.0
        %580 = vmatprep.subr.mxu0 0.0
        %581 = vmatpush1.xpose.msra.mxu0 0.0
        %582 = vmatprep.subr.mxu0 0.0
        %583 = vmatpush1.xpose.msra.mxu0 0.0
        %584 = vmatprep.subr.mxu0 0.0
        %585 = vmatpush1.xpose.msra.mxu0 0.0
        %586 = vmatprep.subr.mxu0 0.0
        %587 = vmatpush1.xpose.msra.mxu0 0.0
        %588 = vmatprep.subr.mxu0 0.0
        %589 = vmatpush1.xpose.msra.mxu0 0.0
        %590 = vmatprep.subr.mxu0 0.0
        %591 = vmatpush1.xpose.msra.mxu0 0.0
        %592 = vmatprep.subr.mxu0 0.0
        %593 = vmatpush1.xpose.msra.mxu0 0.0
        %594 = vmatprep.subr.mxu0 0.0
        %595 = vmatpush1.xpose.msra.mxu0 0.0
        %596 = vmatprep.subr.mxu0 0.0
        %597 = vmatpush1.xpose.msra.mxu0 0.0
        %598 = vmatprep.subr.mxu0 0.0
        %599 = vmatpush1.xpose.msra.mxu0 0.0
        %600 = vmatprep.subr.mxu0 0.0
        %601 = vmatpush1.xpose.msra.mxu0 0.0
        %602 = vmatprep.subr.mxu0 0.0
        %603 = vmatpush1.xpose.msra.mxu0 0.0
        %604 = vmatprep.subr.mxu0 0.0
        %605 = vmatpush1.xpose.msra.mxu0 0.0
        %606 = vmatprep.subr.mxu0 0.0
        %607 = vmatpush1.xpose.msra.mxu0 0.0
        %608 = vmatprep.subr.mxu0 0.0
        %609 = vmatpush1.xpose.msra.mxu0 0.0
        %610 = vmatprep.subr.mxu0 0.0
        %611 = vmatpush1.xpose.msra.mxu0 0.0
        %612 = vmatprep.subr.mxu0 0.0
        %613 = vmatpush1.xpose.msra.mxu0 0.0
        %614 = vmatprep.subr.mxu0 0.0
        %615 = vmatpush1.xpose.msra.mxu0 0.0
        %616 = vmatprep.subr.mxu0 0.0
        %617 = vmatpush1.xpose.msra.mxu0 0.0
        %618 = vmatprep.subr.mxu0 0.0
        %619 = vmatpush1.xpose.msra.mxu0 0.0
        %620 = vmatprep.mubr.f32.mxu0 0.0
        %621 = vmatmul.mubr.f32.gmra.mrb[0].mxu0 %v552
        %v622 = vpop.f32.mrb[0].mxu0
        %v623 = vadd.f32 0.0, %v622
        %v624 = vpop.f32.mrb[0].mxu0
        %625 = vdwg.mxu0
        %v626 = vsel %vm386, %v623, -inf
        %627 = vmax.xlane.f32.xlu0 %v626
        %v628 = vpop.xlane.xlu0 %627
        %v629 = vsub.f32 %v623, %v628
        %v630 = vmul.f32 %v629, 1.442695
        %v631 = vpow.pop %v630
        %v632 = vsel %vm386, %v631, 0.0
        %633 = vadd.xlane.f32.xlu0 %v632
        %v634 = vpop.xlane.xlu0 %633
        %635 = vrot.lane.b32.xlu0 %v382, 56
        %v636 = vpop.permute.xlu0 %635
        %v639 = vsel %vm386, %v631, 0
        %641 = vmatprep.subr.mxu0 0.0
        %642 = vmatpush1.msra.mxu0 %v636
        %643 = vmatprep.subr.mxu0 0.0
        %644 = vmatpush1.msra.mxu0 0.0
        %645 = vmatprep.subr.mxu0 0.0
        %646 = vmatpush1.msra.mxu0 0.0
        %647 = vmatprep.subr.mxu0 0.0
        %648 = vmatpush1.msra.mxu0 0.0
        %649 = vmatprep.subr.mxu0 0.0
        %650 = vmatpush1.msra.mxu0 0.0
        %651 = vmatprep.subr.mxu0 0.0
        %652 = vmatpush1.msra.mxu0 0.0
        %653 = vmatprep.subr.mxu0 0.0
        %654 = vmatpush1.msra.mxu0 0.0
        %655 = vmatprep.subr.mxu0 0.0
        %656 = vmatpush1.msra.mxu0 0.0
        %657 = vmatprep.subr.mxu0 0.0
        %658 = vmatpush1.msra.mxu0 0.0
        %659 = vmatprep.subr.mxu0 0.0
        %660 = vmatpush1.msra.mxu0 0.0
        %661 = vmatprep.subr.mxu0 0.0
        %662 = vmatpush1.msra.mxu0 0.0
        %663 = vmatprep.subr.mxu0 0.0
        %664 = vmatpush1.msra.mxu0 0.0
        %665 = vmatprep.subr.mxu0 0.0
        %666 = vmatpush1.msra.mxu0 0.0
        %667 = vmatprep.subr.mxu0 0.0
        %668 = vmatpush1.msra.mxu0 0.0
        %669 = vmatprep.subr.mxu0 0.0
        %670 = vmatpush1.msra.mxu0 0.0
        %671 = vmatprep.subr.mxu0 0.0
        %672 = vmatpush1.msra.mxu0 0.0
        %673 = vmatprep.subr.mxu0 0.0
        %674 = vmatpush1.msra.mxu0 0.0
        %675 = vmatprep.subr.mxu0 0.0
        %676 = vmatpush1.msra.mxu0 0.0
        %677 = vmatprep.subr.mxu0 0.0
        %678 = vmatpush1.msra.mxu0 0.0
        %679 = vmatprep.subr.mxu0 0.0
        %680 = vmatpush1.msra.mxu0 0.0
        %681 = vmatprep.subr.mxu0 0.0
        %682 = vmatpush1.msra.mxu0 0.0
        %683 = vmatprep.subr.mxu0 0.0
        %684 = vmatpush1.msra.mxu0 0.0
        %685 = vmatprep.subr.mxu0 0.0
        %686 = vmatpush1.msra.mxu0 0.0
        %687 = vmatprep.subr.mxu0 0.0
        %688 = vmatpush1.msra.mxu0 0.0
        %689 = vmatprep.subr.mxu0 0.0
        %690 = vmatpush1.msra.mxu0 0.0
        %691 = vmatprep.subr.mxu0 0.0
        %692 = vmatpush1.msra.mxu0 0.0
        %693 = vmatprep.subr.mxu0 0.0
        %694 = vmatpush1.msra.mxu0 0.0
        %695 = vmatprep.subr.mxu0 0.0
        %696 = vmatpush1.msra.mxu0 0.0
        %697 = vmatprep.subr.mxu0 0.0
        %698 = vmatpush1.msra.mxu0 0.0
        %699 = vmatprep.subr.mxu0 0.0
        %700 = vmatpush1.msra.mxu0 0.0
        %701 = vmatprep.subr.mxu0 0.0
        %702 = vmatpush1.msra.mxu0 0.0
        %703 = vmatprep.subr.mxu0 0.0
        %704 = vmatpush1.msra.mxu0 0.0
        %705 = vmatprep.mubr.f32.mxu0 0.0
        %706 = vmatmul.mubr.f32.gmra.mrb[0].mxu0 %v639
        %v707 = vpop.f32.mrb[0].mxu0
        %v708 = vadd.f32 0.0, %v707
        %v709 = vpop.f32.mrb[0].mxu0
        %710 = vdwg.mxu0
        %v711 = vrcp.pop %v634
        %v712 = vmul.f32 %v708, %v711
        %713 = vrot.lane.b32.xlu0 %v382, 112
        %v714 = vpop.permute.xlu0 %713
        %715 = vrot.lane.b32.xlu0 %v382, 80
        %v716 = vpop.permute.xlu0 %715
        %v717 = vsel %vm386, %v714, 0
        %v719 = vsel %vm386, %v716, 0
        %721 = vmatprep.subr.mxu0 0.0
        %722 = vmatpush1.xpose.msra.mxu0 %v719
        %723 = vmatprep.subr.mxu0 0.0
        %724 = vmatpush1.xpose.msra.mxu0 0.0
        %725 = vmatprep.subr.mxu0 0.0
        %726 = vmatpush1.xpose.msra.mxu0 0.0
        %727 = vmatprep.subr.mxu0 0.0
        %728 = vmatpush1.xpose.msra.mxu0 0.0
        %729 = vmatprep.subr.mxu0 0.0
        %730 = vmatpush1.xpose.msra.mxu0 0.0
        %731 = vmatprep.subr.mxu0 0.0
        %732 = vmatpush1.xpose.msra.mxu0 0.0
        %733 = vmatprep.subr.mxu0 0.0
        %734 = vmatpush1.xpose.msra.mxu0 0.0
        %735 = vmatprep.subr.mxu0 0.0
        %736 = vmatpush1.xpose.msra.mxu0 0.0
        %737 = vmatprep.subr.mxu0 0.0
        %738 = vmatpush1.xpose.msra.mxu0 0.0
        %739 = vmatprep.subr.mxu0 0.0
        %740 = vmatpush1.xpose.msra.mxu0 0.0
        %741 = vmatprep.subr.mxu0 0.0
        %742 = vmatpush1.xpose.msra.mxu0 0.0
        %743 = vmatprep.subr.mxu0 0.0
        %744 = vmatpush1.xpose.msra.mxu0 0.0
        %745 = vmatprep.subr.mxu0 0.0
        %746 = vmatpush1.xpose.msra.mxu0 0.0
        %747 = vmatprep.subr.mxu0 0.0
        %748 = vmatpush1.xpose.msra.mxu0 0.0
        %749 = vmatprep.subr.mxu0 0.0
        %750 = vmatpush1.xpose.msra.mxu0 0.0
        %751 = vmatprep.subr.mxu0 0.0
        %752 = vmatpush1.xpose.msra.mxu0 0.0
        %753 = vmatprep.subr.mxu0 0.0
        %754 = vmatpush1.xpose.msra.mxu0 0.0
        %755 = vmatprep.subr.mxu0 0.0
        %756 = vmatpush1.xpose.msra.mxu0 0.0
        %757 = vmatprep.subr.mxu0 0.0
        %758 = vmatpush1.xpose.msra.mxu0 0.0
        %759 = vmatprep.subr.mxu0 0.0
        %760 = vmatpush1.xpose.msra.mxu0 0.0
        %761 = vmatprep.subr.mxu0 0.0
        %762 = vmatpush1.xpose.msra.mxu0 0.0
        %763 = vmatprep.subr.mxu0 0.0
        %764 = vmatpush1.xpose.msra.mxu0 0.0
        %765 = vmatprep.subr.mxu0 0.0
        %766 = vmatpush1.xpose.msra.mxu0 0.0
        %767 = vmatprep.subr.mxu0 0.0
        %768 = vmatpush1.xpose.msra.mxu0 0.0
        %769 = vmatprep.subr.mxu0 0.0
        %770 = vmatpush1.xpose.msra.mxu0 0.0
        %771 = vmatprep.subr.mxu0 0.0
        %772 = vmatpush1.xpose.msra.mxu0 0.0
        %773 = vmatprep.subr.mxu0 0.0
        %774 = vmatpush1.xpose.msra.mxu0 0.0
        %775 = vmatprep.subr.mxu0 0.0
        %776 = vmatpush1.xpose.msra.mxu0 0.0
        %777 = vmatprep.subr.mxu0 0.0
        %778 = vmatpush1.xpose.msra.mxu0 0.0
        %779 = vmatprep.subr.mxu0 0.0
        %780 = vmatpush1.xpose.msra.mxu0 0.0
        %781 = vmatprep.subr.mxu0 0.0
        %782 = vmatpush1.xpose.msra.mxu0 0.0
        %783 = vmatprep.subr.mxu0 0.0
        %784 = vmatpush1.xpose.msra.mxu0 0.0
        %785 = vmatprep.mubr.f32.mxu0 0.0
        %786 = vmatmul.mubr.f32.gmra.mrb[0].mxu0 %v717
        %v787 = vpop.f32.mrb[0].mxu0
        %v788 = vadd.f32 0.0, %v787
        %v789 = vpop.f32.mrb[0].mxu0
        %790 = vdwg.mxu0
        %v791 = vsel %vm386, %v788, -inf
        %792 = vmax.xlane.f32.xlu0 %v791
        %v793 = vpop.xlane.xlu0 %792
        %v794 = vsub.f32 %v788, %v793
        %v795 = vmul.f32 %v794, 1.442695
        %v796 = vpow.pop %v795
        %v797 = vsel %vm386, %v796, 0.0
        %798 = vadd.xlane.f32.xlu0 %v797
        %v799 = vpop.xlane.xlu0 %798
        %800 = vrot.lane.b32.xlu0 %v382, 48
        %v801 = vpop.permute.xlu0 %800
        %v804 = vsel %vm386, %v796, 0
        %806 = vmatprep.subr.mxu0 0.0
        %807 = vmatpush1.msra.mxu0 %v801
        %808 = vmatprep.subr.mxu0 0.0
        %809 = vmatpush1.msra.mxu0 0.0
        %810 = vmatprep.subr.mxu0 0.0
        %811 = vmatpush1.msra.mxu0 0.0
        %812 = vmatprep.subr.mxu0 0.0
        %813 = vmatpush1.msra.mxu0 0.0
        %814 = vmatprep.subr.mxu0 0.0
        %815 = vmatpush1.msra.mxu0 0.0
        %816 = vmatprep.subr.mxu0 0.0
        %817 = vmatpush1.msra.mxu0 0.0
        %818 = vmatprep.subr.mxu0 0.0
        %819 = vmatpush1.msra.mxu0 0.0
        %820 = vmatprep.subr.mxu0 0.0
        %821 = vmatpush1.msra.mxu0 0.0
        %822 = vmatprep.subr.mxu0 0.0
        %823 = vmatpush1.msra.mxu0 0.0
        %824 = vmatprep.subr.mxu0 0.0
        %825 = vmatpush1.msra.mxu0 0.0
        %826 = vmatprep.subr.mxu0 0.0
        %827 = vmatpush1.msra.mxu0 0.0
        %828 = vmatprep.subr.mxu0 0.0
        %829 = vmatpush1.msra.mxu0 0.0
        %830 = vmatprep.subr.mxu0 0.0
        %831 = vmatpush1.msra.mxu0 0.0
        %832 = vmatprep.subr.mxu0 0.0
        %833 = vmatpush1.msra.mxu0 0.0
        %834 = vmatprep.subr.mxu0 0.0
        %835 = vmatpush1.msra.mxu0 0.0
        %836 = vmatprep.subr.mxu0 0.0
        %837 = vmatpush1.msra.mxu0 0.0
        %838 = vmatprep.subr.mxu0 0.0
        %839 = vmatpush1.msra.mxu0 0.0
        %840 = vmatprep.subr.mxu0 0.0
        %841 = vmatpush1.msra.mxu0 0.0
        %842 = vmatprep.subr.mxu0 0.0
        %843 = vmatpush1.msra.mxu0 0.0
        %844 = vmatprep.subr.mxu0 0.0
        %845 = vmatpush1.msra.mxu0 0.0
        %846 = vmatprep.subr.mxu0 0.0
        %847 = vmatpush1.msra.mxu0 0.0
        %848 = vmatprep.subr.mxu0 0.0
        %849 = vmatpush1.msra.mxu0 0.0
        %850 = vmatprep.subr.mxu0 0.0
        %851 = vmatpush1.msra.mxu0 0.0
        %852 = vmatprep.subr.mxu0 0.0
        %853 = vmatpush1.msra.mxu0 0.0
        %854 = vmatprep.subr.mxu0 0.0
        %855 = vmatpush1.msra.mxu0 0.0
        %856 = vmatprep.subr.mxu0 0.0
        %857 = vmatpush1.msra.mxu0 0.0
        %858 = vmatprep.subr.mxu0 0.0
        %859 = vmatpush1.msra.mxu0 0.0
        %860 = vmatprep.subr.mxu0 0.0
        %861 = vmatpush1.msra.mxu0 0.0
        %862 = vmatprep.subr.mxu0 0.0
        %863 = vmatpush1.msra.mxu0 0.0
        %864 = vmatprep.subr.mxu0 0.0
        %865 = vmatpush1.msra.mxu0 0.0
        %866 = vmatprep.subr.mxu0 0.0
        %867 = vmatpush1.msra.mxu0 0.0
        %868 = vmatprep.subr.mxu0 0.0
        %869 = vmatpush1.msra.mxu0 0.0
        %870 = vmatprep.mubr.f32.mxu0 0.0
        %871 = vmatmul.mubr.f32.gmra.mrb[0].mxu0 %v804
        %v872 = vpop.f32.mrb[0].mxu0
        %v873 = vadd.f32 0.0, %v872
        %v874 = vpop.f32.mrb[0].mxu0
        %875 = vdwg.mxu0
        %v876 = vrcp.pop %v799
        %v877 = vmul.f32 %v873, %v876
        %878 = vrot.lane.b32.xlu0 %v382, 104
        %v879 = vpop.permute.xlu0 %878
        %880 = vrot.lane.b32.xlu0 %v382, 72
        %v881 = vpop.permute.xlu0 %880
        %v882 = vsel %vm386, %v879, 0
        %v884 = vsel %vm386, %v881, 0
        %886 = vmatprep.subr.mxu0 0.0
        %887 = vmatpush1.xpose.msra.mxu0 %v884
        %888 = vmatprep.subr.mxu0 0.0
        %889 = vmatpush1.xpose.msra.mxu0 0.0
        %890 = vmatprep.subr.mxu0 0.0
        %891 = vmatpush1.xpose.msra.mxu0 0.0
        %892 = vmatprep.subr.mxu0 0.0
        %893 = vmatpush1.xpose.msra.mxu0 0.0
        %894 = vmatprep.subr.mxu0 0.0
        %895 = vmatpush1.xpose.msra.mxu0 0.0
        %896 = vmatprep.subr.mxu0 0.0
        %897 = vmatpush1.xpose.msra.mxu0 0.0
        %898 = vmatprep.subr.mxu0 0.0
        %899 = vmatpush1.xpose.msra.mxu0 0.0
        %900 = vmatprep.subr.mxu0 0.0
        %901 = vmatpush1.xpose.msra.mxu0 0.0
        %902 = vmatprep.subr.mxu0 0.0
        %903 = vmatpush1.xpose.msra.mxu0 0.0
        %904 = vmatprep.subr.mxu0 0.0
        %905 = vmatpush1.xpose.msra.mxu0 0.0
        %906 = vmatprep.subr.mxu0 0.0
        %907 = vmatpush1.xpose.msra.mxu0 0.0
        %908 = vmatprep.subr.mxu0 0.0
        %909 = vmatpush1.xpose.msra.mxu0 0.0
        %910 = vmatprep.subr.mxu0 0.0
        %911 = vmatpush1.xpose.msra.mxu0 0.0
        %912 = vmatprep.subr.mxu0 0.0
        %913 = vmatpush1.xpose.msra.mxu0 0.0
        %914 = vmatprep.subr.mxu0 0.0
        %915 = vmatpush1.xpose.msra.mxu0 0.0
        %916 = vmatprep.subr.mxu0 0.0
        %917 = vmatpush1.xpose.msra.mxu0 0.0
        %918 = vmatprep.subr.mxu0 0.0
        %919 = vmatpush1.xpose.msra.mxu0 0.0
        %920 = vmatprep.subr.mxu0 0.0
        %921 = vmatpush1.xpose.msra.mxu0 0.0
        %922 = vmatprep.subr.mxu0 0.0
        %923 = vmatpush1.xpose.msra.mxu0 0.0
        %924 = vmatprep.subr.mxu0 0.0
        %925 = vmatpush1.xpose.msra.mxu0 0.0
        %926 = vmatprep.subr.mxu0 0.0
        %927 = vmatpush1.xpose.msra.mxu0 0.0
        %928 = vmatprep.subr.mxu0 0.0
        %929 = vmatpush1.xpose.msra.mxu0 0.0
        %930 = vmatprep.subr.mxu0 0.0
        %931 = vmatpush1.xpose.msra.mxu0 0.0
        %932 = vmatprep.subr.mxu0 0.0
        %933 = vmatpush1.xpose.msra.mxu0 0.0
        %934 = vmatprep.subr.mxu0 0.0
        %935 = vmatpush1.xpose.msra.mxu0 0.0
        %936 = vmatprep.subr.mxu0 0.0
        %937 = vmatpush1.xpose.msra.mxu0 0.0
        %938 = vmatprep.subr.mxu0 0.0
        %939 = vmatpush1.xpose.msra.mxu0 0.0
        %940 = vmatprep.subr.mxu0 0.0
        %941 = vmatpush1.xpose.msra.mxu0 0.0
        %942 = vmatprep.subr.mxu0 0.0
        %943 = vmatpush1.xpose.msra.mxu0 0.0
        %944 = vmatprep.subr.mxu0 0.0
        %945 = vmatpush1.xpose.msra.mxu0 0.0
        %946 = vmatprep.subr.mxu0 0.0
        %947 = vmatpush1.xpose.msra.mxu0 0.0
        %948 = vmatprep.subr.mxu0 0.0
        %949 = vmatpush1.xpose.msra.mxu0 0.0
        %950 = vmatprep.mubr.f32.mxu0 0.0
        %951 = vmatmul.mubr.f32.gmra.mrb[0].mxu0 %v882
        %v952 = vpop.f32.mrb[0].mxu0
        %v953 = vadd.f32 0.0, %v952
        %v954 = vpop.f32.mrb[0].mxu0
        %955 = vdwg.mxu0
        %v956 = vsel %vm386, %v953, -inf
        %957 = vmax.xlane.f32.xlu0 %v956
        %v958 = vpop.xlane.xlu0 %957
        %v959 = vsub.f32 %v953, %v958
        %v960 = vmul.f32 %v959, 1.442695
        %v961 = vpow.pop %v960
        %v962 = vsel %vm386, %v961, 0.0
        %963 = vadd.xlane.f32.xlu0 %v962
        %v964 = vpop.xlane.xlu0 %963
        %965 = vrot.lane.b32.xlu0 %v382, 40
        %v966 = vpop.permute.xlu0 %965
        %v969 = vsel %vm386, %v961, 0
        %971 = vmatprep.subr.mxu0 0.0
        %972 = vmatpush1.msra.mxu0 %v966
        %973 = vmatprep.subr.mxu0 0.0
        %974 = vmatpush1.msra.mxu0 0.0
        %975 = vmatprep.subr.mxu0 0.0
        %976 = vmatpush1.msra.mxu0 0.0
        %977 = vmatprep.subr.mxu0 0.0
        %978 = vmatpush1.msra.mxu0 0.0
        %979 = vmatprep.subr.mxu0 0.0
        %980 = vmatpush1.msra.mxu0 0.0
        %981 = vmatprep.subr.mxu0 0.0
        %982 = vmatpush1.msra.mxu0 0.0
        %983 = vmatprep.subr.mxu0 0.0
        %984 = vmatpush1.msra.mxu0 0.0
        %985 = vmatprep.subr.mxu0 0.0
        %986 = vmatpush1.msra.mxu0 0.0
        %987 = vmatprep.subr.mxu0 0.0
        %988 = vmatpush1.msra.mxu0 0.0
        %989 = vmatprep.subr.mxu0 0.0
        %990 = vmatpush1.msra.mxu0 0.0
        %991 = vmatprep.subr.mxu0 0.0
        %992 = vmatpush1.msra.mxu0 0.0
        %993 = vmatprep.subr.mxu0 0.0
        %994 = vmatpush1.msra.mxu0 0.0
        %995 = vmatprep.subr.mxu0 0.0
        %996 = vmatpush1.msra.mxu0 0.0
        %997 = vmatprep.subr.mxu0 0.0
        %998 = vmatpush1.msra.mxu0 0.0
        %999 = vmatprep.subr.mxu0 0.0
        %1000 = vmatpush1.msra.mxu0 0.0
        %1001 = vmatprep.subr.mxu0 0.0
        %1002 = vmatpush1.msra.mxu0 0.0
        %1003 = vmatprep.subr.mxu0 0.0
        %1004 = vmatpush1.msra.mxu0 0.0
        %1005 = vmatprep.subr.mxu0 0.0
        %1006 = vmatpush1.msra.mxu0 0.0
        %1007 = vmatprep.subr.mxu0 0.0
        %1008 = vmatpush1.msra.mxu0 0.0
        %1009 = vmatprep.subr.mxu0 0.0
        %1010 = vmatpush1.msra.mxu0 0.0
        %1011 = vmatprep.subr.mxu0 0.0
        %1012 = vmatpush1.msra.mxu0 0.0
        %1013 = vmatprep.subr.mxu0 0.0
        %1014 = vmatpush1.msra.mxu0 0.0
        %1015 = vmatprep.subr.mxu0 0.0
        %1016 = vmatpush1.msra.mxu0 0.0
        %1017 = vmatprep.subr.mxu0 0.0
        %1018 = vmatpush1.msra.mxu0 0.0
        %1019 = vmatprep.subr.mxu0 0.0
        %1020 = vmatpush1.msra.mxu0 0.0
        %1021 = vmatprep.subr.mxu0 0.0
        %1022 = vmatpush1.msra.mxu0 0.0
        %1023 = vmatprep.subr.mxu0 0.0
        %1024 = vmatpush1.msra.mxu0 0.0
        %1025 = vmatprep.subr.mxu0 0.0
        %1026 = vmatpush1.msra.mxu0 0.0
        %1027 = vmatprep.subr.mxu0 0.0
        %1028 = vmatpush1.msra.mxu0 0.0
        %1029 = vmatprep.subr.mxu0 0.0
        %1030 = vmatpush1.msra.mxu0 0.0
        %1031 = vmatprep.subr.mxu0 0.0
        %1032 = vmatpush1.msra.mxu0 0.0
        %1033 = vmatprep.subr.mxu0 0.0
        %1034 = vmatpush1.msra.mxu0 0.0
        %1035 = vmatprep.mubr.f32.mxu0 0.0
        %1036 = vmatmul.mubr.f32.gmra.mrb[0].mxu0 %v969
        %v1037 = vpop.f32.mrb[0].mxu0
        %v1038 = vadd.f32 0.0, %v1037
        %v1039 = vpop.f32.mrb[0].mxu0
        %1040 = vdwg.mxu0
        %v1041 = vrcp.pop %v964
        %v1042 = vmul.f32 %v1038, %v1041
        %1044 = vrot.lane.b32.xlu0 %v712, 8
        %v1045 = vpop.permute.xlu0 %1044
        %1048 = vrot.lane.b32.xlu0 %v877, 16
        %v1049 = vpop.permute.xlu0 %1048
        %1052 = vrot.lane.b32.xlu0 %v1042, 24
        %v1053 = vpop.permute.xlu0 %1052
        %v1055 = vsel %vm386, %v547, %v1045
        %vm1056 = vcmask 130048
        %v1057 = vsel %vm1056, %v1055, %v1049
        %vm1058 = vcmask 195584
        %v1059 = vsel %vm1058, %v1057, %v1053
        %1060 = vst.msk [vmem:[#allocation3] sm:$0xff] %vm306, %v1059
        %v1061 = vld [vmem:[#allocation3] sm:$0xff]
        %v1062 = vld [vmem:[#allocation10] sm:$0xff]
        %v1063 = vld [vmem:[#allocation10 + $0x8] sm:$0xff]
        %v1064 = vld [vmem:[#allocation10 + $0x10] sm:$0xff]
        %v1065 = vld [vmem:[#allocation10 + $0x18] sm:$0xff]
        %v1066 = vld [vmem:[#allocation12] sm:$0x1]
        %v1068 = vlaneseq
        %v1069 = vshrl.u32 %v1068, 7
        %v1070 = vsub.s32 0, %v1069
        %v1071 = vrot.slane %v1066, %v1070
        %v1074 = vsel %vm306, %v1061, 0
        %1076 = vmatprep.subr.mxu0 0.0
        %1077 = vmatpush1.msra.mxu0 %v1062
        %1078 = vmatprep.subr.mxu0 0.0
        %1079 = vmatpush1.msra.mxu0 %v1063
        %1080 = vmatprep.subr.mxu0 0.0
        %1081 = vmatpush1.msra.mxu0 %v1064
        %1082 = vmatprep.subr.mxu0 0.0
        %1083 = vmatpush1.msra.mxu0 %v1065
        %1084 = vmatprep.subr.mxu0 0.0
        %1085 = vmatpush1.msra.mxu0 0.0
        %1086 = vmatprep.subr.mxu0 0.0
        %1087 = vmatpush1.msra.mxu0 0.0
        %1088 = vmatprep.subr.mxu0 0.0
        %1089 = vmatpush1.msra.mxu0 0.0
        %1090 = vmatprep.subr.mxu0 0.0
        %1091 = vmatpush1.msra.mxu0 0.0
        %1092 = vmatprep.subr.mxu0 0.0
        %1093 = vmatpush1.msra.mxu0 0.0
        %1094 = vmatprep.subr.mxu0 0.0
        %1095 = vmatpush1.msra.mxu0 0.0
        %1096 = vmatprep.subr.mxu0 0.0
        %1097 = vmatpush1.msra.mxu0 0.0
        %1098 = vmatprep.subr.mxu0 0.0
        %1099 = vmatpush1.msra.mxu0 0.0
        %1100 = vmatprep.subr.mxu0 0.0
        %1101 = vmatpush1.msra.mxu0 0.0
        %1102 = vmatprep.subr.mxu0 0.0
        %1103 = vmatpush1.msra.mxu0 0.0
        %1104 = vmatprep.subr.mxu0 0.0
        %1105 = vmatpush1.msra.mxu0 0.0
        %1106 = vmatprep.subr.mxu0 0.0
        %1107 = vmatpush1.msra.mxu0 0.0
        %1108 = vmatprep.subr.mxu0 0.0
        %1109 = vmatpush1.msra.mxu0 0.0
        %1110 = vmatprep.subr.mxu0 0.0
        %1111 = vmatpush1.msra.mxu0 0.0
        %1112 = vmatprep.subr.mxu0 0.0
        %1113 = vmatpush1.msra.mxu0 0.0
        %1114 = vmatprep.subr.mxu0 0.0
        %1115 = vmatpush1.msra.mxu0 0.0
        %1116 = vmatprep.subr.mxu0 0.0
        %1117 = vmatpush1.msra.mxu0 0.0
        %1118 = vmatprep.subr.mxu0 0.0
        %1119 = vmatpush1.msra.mxu0 0.0
        %1120 = vmatprep.subr.mxu0 0.0
        %1121 = vmatpush1.msra.mxu0 0.0
        %1122 = vmatprep.subr.mxu0 0.0
        %1123 = vmatpush1.msra.mxu0 0.0
        %1124 = vmatprep.subr.mxu0 0.0
        %1125 = vmatpush1.msra.mxu0 0.0
        %1126 = vmatprep.subr.mxu0 0.0
        %1127 = vmatpush1.msra.mxu0 0.0
        %1128 = vmatprep.subr.mxu0 0.0
        %1129 = vmatpush1.msra.mxu0 0.0
        %1130 = vmatprep.subr.mxu0 0.0
        %1131 = vmatpush1.msra.mxu0 0.0
        %1132 = vmatprep.subr.mxu0 0.0
        %1133 = vmatpush1.msra.mxu0 0.0
        %1134 = vmatprep.subr.mxu0 0.0
        %1135 = vmatpush1.msra.mxu0 0.0
        %1136 = vmatprep.subr.mxu0 0.0
        %1137 = vmatpush1.msra.mxu0 0.0
        %1138 = vmatprep.subr.mxu0 0.0
        %1139 = vmatpush1.msra.mxu0 0.0
        %1140 = vmatprep.mubr.f32.mxu0 0.0
        %1141 = vmatmul.mubr.f32.gmra.mrb[0].mxu0 %v1074
        %v1142 = vpop.f32.mrb[0].mxu0
        %v1143 = vadd.f32 %v1071, %v1142
        %v1144 = vpop.f32.mrb[0].mxu0
        %1145 = vdwg.mxu0
        %1146 = vst.msk [vmem:[%s293] sm:$0xff] %vm306, %v1143
        %s1147 = sand.u32 %s142, 1
        %s1148 = scalar_lea.sflag [#allocation6], %s1147
        %s1149 = sand.u32 %s142, 1
        %s1150 = smul.addr %s1149, 8
        %s1151 = scalar_lea.vmem [#allocation13], %s1150
        // Predicated region
        $region61: #{tpu_custom_call.1} parent=39 // pred_check
          %p1152 = pneg %p152
        $region62: #{tpu_custom_call.1} parent=39 // pred_check_branch
          %1154 = sbr.rel (%p1152) target = $region64
        $region63: #{tpu_custom_call.1} parent=39 // pred_region
          %s1156 = ssub.s32 128, 128
          %1157 = vsyncadd %s1148, %s1156
          %s1158 = smul.addr %s24, 128
          %s1159 = scalar_lea.hbm %s5, %s1158
          %s1161 = sshll.u32 %s1151, 4
          %s1162 = int_to_ptr.vmem [resolvable:$true] %s1161
          %1164 = dma.vmem_to_hbm [thread:$0]  %s1162, 128, %s1159, %s1148
        $region64: #{tpu_custom_call.1} parent=39 // pred_fallthru
          _
      $region40: #{tpu_custom_call.1} parent=5 // pred_fallthru
        _
      %p1165 = scmp.le.s32.totalorder 2, %s19
      // Predicated region
      $region65: #{tpu_custom_call.1} parent=5 // pred_check
        %p1166 = pneg %p1165
      $region66: #{tpu_custom_call.1} parent=5 // pred_check_branch
        %1168 = sbr.rel (%p1166) target = $region68
      $region67: #{tpu_custom_call.1} parent=5 // pred_region
        %s1169 = ssub.s32 %s19, 2
        // Predicated region
        $region69: #{tpu_custom_call.1} parent=67 // pred_check
          %p1170 = pneg %p158
        $region70: #{tpu_custom_call.1} parent=67 // pred_check_branch
          %1172 = sbr.rel (%p1170) target = $region72
        $region71: #{tpu_custom_call.1} parent=67 // pred_region
          %s1173 = sand.u32 %s143, 1
          %s1174 = scalar_lea.sflag [#allocation6], %s1173
          %s1175 = sand.u32 %s143, 1
          %s1176 = smul.addr %s1175, 8
          %s1177 = scalar_lea.vmem [#allocation13], %s1176
          %1178 = dma.done %s1174, 128
        $region72: #{tpu_custom_call.1} parent=67 // pred_fallthru
          _
      $region68: #{tpu_custom_call.1} parent=5 // pred_fallthru
        _
    $region6: #{tpu_custom_call.1} parent=1 // loop_footer
      %s23 = sadd.s32 1, %s19
    $region7: #{tpu_custom_call.1} parent=1 // loop_footer_branch
      %18 = sbr.rel target = $region3
    $region8: #{tpu_custom_call.1} parent=1 // loop_exit
      _
    %1179 = vsyncpa [#allocation5], 1
    %s1180 = scalar_lea.sflag [#allocation5], 1
    %1181 = vsyncpa %s1180, 1
    %1182 = vsyncpa [#allocation8], 1
    %1183 = vsyncpa [#allocation11], 1
    %1184 = vsyncpa [#allocation6], 1
    %s1185 = scalar_lea.sflag [#allocation6], 1
    %1186 = vsyncpa %s1185, 1

</llo_original>
